<compile_context>
chip_gen: v5e
topology: v5e:2x2
jax: 0.10.0
libtpu: 0.0.40
codegen_flags: <defaults>
</compile_context>

<pallas_src>
import jax
import jax.numpy as jnp
from jax.experimental import pallas as pl
from jax.experimental.pallas import tpu as pltpu

BATCH = 32  # fixed by the reference forward's view(1, 32, -1)


def _round8(n):
    return ((n + 7) // 8) * 8


def _round128(n):
    return ((n + 127) // 128) * 128


# --------------------------------------------------------------------------
# Kernel
# --------------------------------------------------------------------------
def make_kernel(input_size, enc_hidden, H, offs):
    """Kernel factory closing over static sizes and slab row offsets."""
    r_w1, r_w2, r_w3, r_wh3, r_wout, r_bias = offs
    f32 = jnp.float32

    def kernel(x_ref, w_ref, out_ref):
        x = x_ref[...].astype(f32)

        # ---- static-sliced views into the packed weight slab ----
        w1 = w_ref[r_w1:r_w1 + input_size, 0:enc_hidden]
        w2 = w_ref[r_w2:r_w2 + enc_hidden, 0:enc_hidden]
        w3 = w_ref[r_w3:r_w3 + enc_hidden, 0:H]
        wh3 = w_ref[r_wh3:r_wh3 + H, 0:3 * H]          # whr | whz | whn
        wout = w_ref[r_wout:r_wout + H, 0:2]

        b1 = w_ref[r_bias + 0:r_bias + 1, 0:enc_hidden]
        b2 = w_ref[r_bias + 1:r_bias + 2, 0:enc_hidden]
        b3 = w_ref[r_bias + 2:r_bias + 3, 0:H]
        bh3 = w_ref[r_bias + 3:r_bias + 4, 0:3 * H]    # (bhr+gi_r)|(bhz+gi_z)|bhn
        gin = w_ref[r_bias + 4:r_bias + 5, 0:H]        # gi_n (cannot be folded)
        bout = w_ref[r_bias + 5:r_bias + 6, 0:2]

        # ---- InfluencerBrandEncoder: 3 x (Linear -> ReLU) ----
        h1 = jnp.maximum(jnp.dot(x, w1, preferred_element_type=f32) + b1, 0.0)
        h2 = jnp.maximum(jnp.dot(h1, w2, preferred_element_type=f32) + b2, 0.0)
        enc = jnp.maximum(jnp.dot(h2, w3, preferred_element_type=f32) + b3, 0.0)

        # ---- AcceptRejectDecoder: single GRU step, hidden = enc ----
        gh = jnp.dot(enc, wh3, preferred_element_type=f32) + bh3   # (B, 3H)
        r = jax.nn.sigmoid(gh[:, 0:H])            # gi_r folded into bias
        z = jax.nn.sigmoid(gh[:, H:2 * H])        # gi_z folded into bias
        n = jnp.tanh(gin + r * gh[:, 2 * H:3 * H])
        h_new = (1.0 - z) * n + z * enc           # == gru output[0]

        # ---- out Linear(H, 2) + LogSoftmax(dim=1) ----
        logits = jnp.dot(h_new, wout, preferred_element_type=f32) + bout
        m = jnp.max(logits, axis=1, keepdims=True)
        lse = m + jnp.log(jnp.sum(jnp.exp(logits - m), axis=1, keepdims=True))
        out_ref[...] = logits - lse

    return kernel


# --------------------------------------------------------------------------
# Parameter packing (host side): fold constants, fuse gates, build one slab
# --------------------------------------------------------------------------
def pack_params(params, input_size, enc_hidden, H):
    (w1, b1, w2, b2, w3, b3, emb0,
     wir, wiz, win, bir, biz, binn,
     whr, whz, whn, bhr, bhz, bhn,
     wout, bout) = params

    # Constant input-gate terms (decoder input is always token 0 -> emb row 0).
    gi_r = emb0 @ wir + bir          # (1, H)
    gi_z = emb0 @ wiz + biz
    gi_n = emb0 @ win + binn

    # Fuse hidden-gate weights; fold gi_r / gi_z into the biases (exact).
    wh3 = jnp.concatenate([whr, whz, whn], axis=1)                    # (H, 3H)
    bh3 = jnp.concatenate([bhr + gi_r, bhz + gi_z, bhn], axis=1)      # (1, 3H)

    lanes = _round128(max(enc_hidden, H, 3 * H, 2))

    weight_blocks = [w1, w2, w3, wh3, wout]
    offs = []
    row = 0
    for blk in weight_blocks:
        offs.append(row)
        row += _round8(blk.shape[0])
    r_bias = row
    total_rows = row + 8                      # one (8, lanes) tile for biases

    slab = jnp.zeros((total_rows, lanes), jnp.float32)
    for off, blk in zip(offs, weight_blocks):
        slab = slab.at[off:off + blk.shape[0], 0:blk.shape[1]].set(blk)

    bias_rows = [b1, b2, b3, bh3, gi_n, bout]
    for i, b in enumerate(bias_rows):
        slab = slab.at[r_bias + i, 0:b.shape[1]].set(b[0])

    return slab, tuple(offs) + (r_bias,)


# --------------------------------------------------------------------------
# pallas_call wrapper (gridless, everything resident in VMEM)
# --------------------------------------------------------------------------
def mtl_forward(x, slab, kernel):
    vmem = pltpu.MemorySpace.VMEM
    return pl.pallas_call(
        kernel,
        out_shape=jax.ShapeDtypeStruct((BATCH, 2), jnp.float32),
        in_specs=[pl.BlockSpec(memory_space=vmem),
                  pl.BlockSpec(memory_space=vmem)],
        out_specs=pl.BlockSpec(memory_space=vmem),
    )(x, slab)


# --------------------------------------------------------------------------
# Parameter init (PyTorch-style) and pure-JAX reference
# --------------------------------------------------------------------------
def init_params(key, input_size, enc_hidden, enc_out, dec_hidden):
    assert enc_out == dec_hidden, "forward requires encoder_output_size == decoder_hidden_size"
    ks = jax.random.split(key, 24)

    def lin(k, fan_in, fan_out):
        kw, kb = jax.random.split(k)
        bound = 1.0 / jnp.sqrt(jnp.float32(fan_in))
        w = jax.random.uniform(kw, (fan_in, fan_out), jnp.float32, -bound, bound)  # pre-transposed
        b = jax.random.uniform(kb, (1, fan_out), jnp.float32, -bound, bound)
        return w, b

    w1, b1 = lin(ks[0], input_size, enc_hidden)
    w2, b2 = lin(ks[1], enc_hidden, enc_hidden)
    w3, b3 = lin(ks[2], enc_hidden, enc_out)

    # Embedding(enc_out, dec_hidden); only row 0 is ever used (indices all 0).
    emb = jax.random.normal(ks[3], (enc_out, dec_hidden), jnp.float32)
    emb0 = emb[0:1, :]

    H = dec_hidden
    bound = 1.0 / jnp.sqrt(jnp.float32(H))

    def gw(k):
        return jax.random.uniform(k, (H, H), jnp.float32, -bound, bound)

    def gb(k):
        return jax.random.uniform(k, (1, H), jnp.float32, -bound, bound)

    wir, wiz, win = gw(ks[4]), gw(ks[5]), gw(ks[6])
    whr, whz, whn = gw(ks[7]), gw(ks[8]), gw(ks[9])
    bir, biz, binn = gb(ks[10]), gb(ks[11]), gb(ks[12])
    bhr, bhz, bhn = gb(ks[13]), gb(ks[14]), gb(ks[15])

    wout, bout = lin(ks[16], dec_hidden, 2)

    return (w1, b1, w2, b2, w3, b3,
            emb0,
            wir, wiz, win, bir, biz, binn,
            whr, whz, whn, bhr, bhz, bhn,
            wout, bout)


def reference_forward(x, params):
    (w1, b1, w2, b2, w3, b3, emb0,
     wir, wiz, win, bir, biz, binn,
     whr, whz, whn, bhr, bhz, bhn,
     wout, bout) = params
    h1 = jnp.maximum(x @ w1 + b1, 0.0)
    h2 = jnp.maximum(h1 @ w2 + b2, 0.0)
    enc = jnp.maximum(h2 @ w3 + b3, 0.0)
    gi_r = emb0 @ wir + bir
    gi_z = emb0 @ wiz + biz
    gi_n = emb0 @ win + binn
    gh_r = enc @ whr + bhr
    gh_z = enc @ whz + bhz
    gh_n = enc @ whn + bhn
    r = jax.nn.sigmoid(gi_r + gh_r)
    z = jax.nn.sigmoid(gi_z + gh_z)
    n = jnp.tanh(gi_n + r * gh_n)
    h_new = (1.0 - z) * n + z * enc
    logits = h_new @ wout + bout
    return jax.nn.log_softmax(logits, axis=1)


# TODO(synk): training branch (CrossEntropyLoss when target is not None) and the
# debug prints of the reference module are not part of the inference kernel.

if __name__ == "__main__":
    input_size = 16
    encoder_hidden_size = 32
    encoder_output_size = 32
    decoder_hidden_size = 32

    key = jax.random.PRNGKey(0)
    k_x, k_p = jax.random.split(key)
    x = jax.random.normal(k_x, (BATCH, input_size), jnp.float32)
    params = init_params(k_p, input_size, encoder_hidden_size,
                         encoder_output_size, decoder_hidden_size)

    slab, offs = pack_params(params, input_size, encoder_hidden_size,
                             decoder_hidden_size)
    kernel = make_kernel(input_size, encoder_hidden_size,
                         decoder_hidden_size, offs)

    out = mtl_forward(x, slab, kernel)
    out = jax.block_until_ready(out)

    ref = reference_forward(x, params)
    assert out.shape == (BATCH, 2)
    assert jnp.allclose(out, ref, atol=1e-5, rtol=1e-5), "mismatch vs JAX reference"

    print("KERNEL_OK")
</pallas_src>

<mosaic_0001>
module attributes {stable_mosaic.version = 11 : i64} {
  func.func @kernel(%arg0: memref<32x16xf32, #tpu.memory_space<vmem>>, %arg1: memref<152x128xf32, #tpu.memory_space<vmem>>, %arg2: memref<32x2xf32, #tpu.memory_space<vmem>>) attributes {dimension_semantics = [], scalar_prefetch = 0 : i64, scratch_operands = 0 : i64, tpu.core_type = #tpu.core_type<tc>} {
    %c0 = arith.constant 0 : index
    %c0_0 = arith.constant 0 : index
    %0 = vector.load %arg0[%c0, %c0_0] : memref<32x16xf32, #tpu.memory_space<vmem>>, vector<32x16xf32>
    %c0_1 = arith.constant 0 : index
    %c0_2 = arith.constant 0 : index
    %1 = vector.load %arg1[%c0_1, %c0_2] : memref<152x128xf32, #tpu.memory_space<vmem>>, vector<16x32xf32>
    %c16 = arith.constant 16 : index
    %c0_3 = arith.constant 0 : index
    %2 = vector.load %arg1[%c16, %c0_3] : memref<152x128xf32, #tpu.memory_space<vmem>>, vector<32x32xf32>
    %c48 = arith.constant 48 : index
    %c0_4 = arith.constant 0 : index
    %3 = vector.load %arg1[%c48, %c0_4] : memref<152x128xf32, #tpu.memory_space<vmem>>, vector<32x32xf32>
    %c80 = arith.constant 80 : index
    %c0_5 = arith.constant 0 : index
    %4 = vector.load %arg1[%c80, %c0_5] : memref<152x128xf32, #tpu.memory_space<vmem>>, vector<32x96xf32>
    %c112 = arith.constant 112 : index
    %c0_6 = arith.constant 0 : index
    %5 = vector.load %arg1[%c112, %c0_6] : memref<152x128xf32, #tpu.memory_space<vmem>>, vector<32x2xf32>
    %c144 = arith.constant 144 : index
    %c0_7 = arith.constant 0 : index
    %6 = vector.load %arg1[%c144, %c0_7] : memref<152x128xf32, #tpu.memory_space<vmem>>, vector<1x32xf32>
    %c145 = arith.constant 145 : index
    %c0_8 = arith.constant 0 : index
    %7 = vector.load %arg1[%c145, %c0_8] : memref<152x128xf32, #tpu.memory_space<vmem>>, vector<1x32xf32>
    %c146 = arith.constant 146 : index
    %c0_9 = arith.constant 0 : index
    %8 = vector.load %arg1[%c146, %c0_9] : memref<152x128xf32, #tpu.memory_space<vmem>>, vector<1x32xf32>
    %c147 = arith.constant 147 : index
    %c0_10 = arith.constant 0 : index
    %9 = vector.load %arg1[%c147, %c0_10] : memref<152x128xf32, #tpu.memory_space<vmem>>, vector<1x96xf32>
    %c148 = arith.constant 148 : index
    %c0_11 = arith.constant 0 : index
    %10 = vector.load %arg1[%c148, %c0_11] : memref<152x128xf32, #tpu.memory_space<vmem>>, vector<1x32xf32>
    %c149 = arith.constant 149 : index
    %c0_12 = arith.constant 0 : index
    %11 = vector.load %arg1[%c149, %c0_12] : memref<152x128xf32, #tpu.memory_space<vmem>>, vector<1x2xf32>
    %cst = arith.constant dense<0.000000e+00> : vector<32x32xf32>
    %12 = tpu.matmul %0, %1, %cst {dimension_numbers = #tpu.dot_dimension_numbers<[1], [0], [0], [1], [0, 0, 1, 1], [], []>} : vector<32x16xf32>, vector<16x32xf32>, vector<32x32xf32> -> vector<32x32xf32>
    %13 = vector.broadcast %6 : vector<1x32xf32> to vector<32x32xf32>
    %14 = arith.addf %12, %13 : vector<32x32xf32>
    %cst_13 = arith.constant 0.000000e+00 : f32
    %15 = vector.broadcast %cst_13 : f32 to vector<32x32xf32>
    %16 = arith.maximumf %14, %15 : vector<32x32xf32>
    %cst_14 = arith.constant dense<0.000000e+00> : vector<32x32xf32>
    %17 = tpu.matmul %16, %2, %cst_14 {dimension_numbers = #tpu.dot_dimension_numbers<[1], [0], [0], [1], [0, 0, 1, 1], [], []>} : vector<32x32xf32>, vector<32x32xf32>, vector<32x32xf32> -> vector<32x32xf32>
    %18 = vector.broadcast %7 : vector<1x32xf32> to vector<32x32xf32>
    %19 = arith.addf %17, %18 : vector<32x32xf32>
    %cst_15 = arith.constant 0.000000e+00 : f32
    %20 = vector.broadcast %cst_15 : f32 to vector<32x32xf32>
    %21 = arith.maximumf %19, %20 : vector<32x32xf32>
    %cst_16 = arith.constant dense<0.000000e+00> : vector<32x32xf32>
    %22 = tpu.matmul %21, %3, %cst_16 {dimension_numbers = #tpu.dot_dimension_numbers<[1], [0], [0], [1], [0, 0, 1, 1], [], []>} : vector<32x32xf32>, vector<32x32xf32>, vector<32x32xf32> -> vector<32x32xf32>
    %23 = vector.broadcast %8 : vector<1x32xf32> to vector<32x32xf32>
    %24 = arith.addf %22, %23 : vector<32x32xf32>
    %cst_17 = arith.constant 0.000000e+00 : f32
    %25 = vector.broadcast %cst_17 : f32 to vector<32x32xf32>
    %26 = arith.maximumf %24, %25 : vector<32x32xf32>
    %cst_18 = arith.constant dense<0.000000e+00> : vector<32x96xf32>
    %27 = tpu.matmul %26, %4, %cst_18 {dimension_numbers = #tpu.dot_dimension_numbers<[1], [0], [0], [1], [0, 0, 1, 1], [], []>} : vector<32x32xf32>, vector<32x96xf32>, vector<32x96xf32> -> vector<32x96xf32>
    %28 = vector.broadcast %9 : vector<1x96xf32> to vector<32x96xf32>
    %29 = arith.addf %27, %28 : vector<32x96xf32>
    %30 = vector.extract_strided_slice %29 {offsets = [0, 0], sizes = [32, 32], strides = [1, 1]} : vector<32x96xf32> to vector<32x32xf32>
    %31 = arith.negf %30 : vector<32x32xf32>
    %32 = math.exp %31 : vector<32x32xf32>
    %cst_19 = arith.constant 1.000000e+00 : f32
    %33 = vector.broadcast %cst_19 : f32 to vector<32x32xf32>
    %34 = arith.addf %33, %32 : vector<32x32xf32>
    %35 = arith.divf %33, %34 : vector<32x32xf32>
    %36 = vector.extract_strided_slice %29 {offsets = [0, 32], sizes = [32, 32], strides = [1, 1]} : vector<32x96xf32> to vector<32x32xf32>
    %37 = arith.negf %36 : vector<32x32xf32>
    %38 = math.exp %37 : vector<32x32xf32>
    %cst_20 = arith.constant 1.000000e+00 : f32
    %39 = vector.broadcast %cst_20 : f32 to vector<32x32xf32>
    %40 = arith.addf %39, %38 : vector<32x32xf32>
    %41 = arith.divf %39, %40 : vector<32x32xf32>
    %42 = vector.extract_strided_slice %29 {offsets = [0, 64], sizes = [32, 32], strides = [1, 1]} : vector<32x96xf32> to vector<32x32xf32>
    %43 = arith.mulf %35, %42 : vector<32x32xf32>
    %44 = vector.broadcast %10 : vector<1x32xf32> to vector<32x32xf32>
    %45 = arith.addf %44, %43 : vector<32x32xf32>
    %46 = math.tanh %45 : vector<32x32xf32>
    %cst_21 = arith.constant 1.000000e+00 : f32
    %47 = vector.broadcast %cst_21 : f32 to vector<32x32xf32>
    %48 = arith.subf %47, %41 : vector<32x32xf32>
    %49 = arith.mulf %48, %46 : vector<32x32xf32>
    %50 = arith.mulf %41, %26 : vector<32x32xf32>
    %51 = arith.addf %49, %50 : vector<32x32xf32>
    %cst_22 = arith.constant dense<0.000000e+00> : vector<32x2xf32>
    %52 = tpu.matmul %51, %5, %cst_22 {dimension_numbers = #tpu.dot_dimension_numbers<[1], [0], [0], [1], [0, 0, 1, 1], [], []>} : vector<32x32xf32>, vector<32x2xf32>, vector<32x2xf32> -> vector<32x2xf32>
    %53 = vector.broadcast %11 : vector<1x2xf32> to vector<32x2xf32>
    %54 = arith.addf %52, %53 : vector<32x2xf32>
    %cst_23 = arith.constant dense<0xFF800000> : vector<32xf32>
    %55 = vector.multi_reduction <maximumf>, %54, %cst_23 [1] : vector<32x2xf32> to vector<32xf32>
    %56 = vector.shape_cast %55 : vector<32xf32> to vector<32x1xf32>
    %57 = vector.broadcast %56 : vector<32x1xf32> to vector<32x2xf32>
    %58 = arith.subf %54, %57 : vector<32x2xf32>
    %59 = math.exp %58 : vector<32x2xf32>
    %cst_24 = arith.constant dense<0.000000e+00> : vector<32xf32>
    %60 = vector.multi_reduction <add>, %59, %cst_24 [1] : vector<32x2xf32> to vector<32xf32>
    %61 = vector.shape_cast %60 : vector<32xf32> to vector<32x1xf32>
    %62 = math.log %61 : vector<32x1xf32>
    %63 = arith.addf %56, %62 : vector<32x1xf32>
    %64 = vector.broadcast %63 : vector<32x1xf32> to vector<32x2xf32>
    %65 = arith.subf %54, %64 : vector<32x2xf32>
    %c0_25 = arith.constant 0 : index
    %c0_26 = arith.constant 0 : index
    %66 = vector.load %arg2[%c0_25, %c0_26] : memref<32x2xf32, #tpu.memory_space<vmem>>, vector<32x2xf32>
    tpu.vector_store %arg2[%c0_25, %c0_26], %65 {strides = array<i32>} : memref<32x2xf32, #tpu.memory_space<vmem>>, vector<32x2xf32>,
    return
  }
}

</mosaic_0001>

<llo_original>
// kernel: tpu_custom_call.1
$region0: #{tpu_custom_call.1}
  #allocation0 [shape = 'u32[]', space=smem, size = 0x4, offset = 0x4, fixed_abs, tag = 'smem constant byte address 0x4 - core index']
  #allocation1 [shape = 'u32[72,128]{1,0:T(1,128)}', space=vmem, size = 0x9000, scoped, tag = 'internal scratch']
  %s0 = inlined_call_operand.vmem [shape: f32[32,16], index: 0, kind: input, shape index: {}]
  %s1 = inlined_call_operand.hbm [shape: f32[152,128], index: 1, kind: input, shape index: {}]
  %s2 = inlined_call_operand.vmem [shape: f32[32,2], index: 2, kind: output, shape index: {}]
  %s3 = sld [smem:[#allocation0]]
  $region22: #{tpu_custom_call.1} parent=0
    _
  %s5 = ssub.s32 1, %s3
  %s6 = scalar_select 0, %s5, %s3
  $region1: #{tpu_custom_call.1} parent=0
    #allocation2 [shape = 'u8[77824]{0}', space=vmem, size = 0x13000, scoped, tag = 'input window, operand 1, single buffered']
    #allocation3 [shape = 's32[1]{0}', space=sflag, size = 0x4, scoped, tag = 'scoped memory for tpu_custom_call.1']
    %7 = vsyncpa [#allocation3], 0
    // Predicated region
    $region2: #{tpu_custom_call.1} parent=1 // pred_check
      _
    $region3: #{tpu_custom_call.1} parent=1 // pred_check_branch
      %9 = sbr.rel (0) target = $region5
    $region4: #{tpu_custom_call.1} parent=1 // pred_region
      _
    $region5: #{tpu_custom_call.1} parent=1 // pred_fallthru
      _
    // Predicated region
    $region6: #{tpu_custom_call.1} parent=1 // pred_check
      _
    $region7: #{tpu_custom_call.1} parent=1 // pred_check_branch
      %11 = sbr.rel (0) target = $region9
    $region8: #{tpu_custom_call.1} parent=1 // pred_region
      %13 = vsyncadd [#allocation3], 0
      %s14 = sshll.u32 %s1, 4
      %s15 = int_to_ptr.hbm [resolvable:$true] %s14
      %s16 = sshll.u32 [#allocation2], 4
      %s17 = int_to_ptr.vmem [resolvable:$true] %s16
      %22 = dma.hbm_to_vmem [thread:$0]  %s15, 2432, %s17, [#allocation3], 128, 128, 8
    $region9: #{tpu_custom_call.1} parent=1 // pred_fallthru
      _
    // Predicated region
    $region10: #{tpu_custom_call.1} parent=1 // pred_check
      _
    $region11: #{tpu_custom_call.1} parent=1 // pred_check_branch
      %24 = sbr.rel (0) target = $region13
    $region12: #{tpu_custom_call.1} parent=1 // pred_region
      %26 = dma.done [#allocation3], 2432
    $region13: #{tpu_custom_call.1} parent=1 // pred_fallthru
      _
    %v27 = vld [vmem:[%s0] sm:$0xff]
    %v28 = vld [vmem:[%s0 + $0x8] sm:$0xff]
    %v29 = vld [vmem:[%s0 + $0x10] sm:$0xff]
    %v30 = vld [vmem:[%s0 + $0x18] sm:$0xff]
    %v31 = vld [vmem:[#allocation2] sm:$0xff]
    %v32 = vld [vmem:[#allocation2 + $0x8] sm:$0xff]
    %v33 = vld [vmem:[#allocation2 + $0x10] sm:$0xff]
    %v34 = vld [vmem:[#allocation2 + $0x18] sm:$0xff]
    %v35 = vld [vmem:[#allocation2 + $0x20] sm:$0xff]
    %v36 = vld [vmem:[#allocation2 + $0x28] sm:$0xff]
    %v37 = vld [vmem:[#allocation2 + $0x30] sm:$0xff]
    %v38 = vld [vmem:[#allocation2 + $0x38] sm:$0xff]
    %v39 = vld [vmem:[#allocation2 + $0x40] sm:$0xff]
    %v40 = vld [vmem:[#allocation2 + $0x48] sm:$0xff]
    %v41 = vld [vmem:[#allocation2 + $0x50] sm:$0xff]
    %v42 = vld [vmem:[#allocation2 + $0x58] sm:$0xff]
    %v43 = vld [vmem:[#allocation2 + $0x60] sm:$0xff]
    %v44 = vld [vmem:[#allocation2 + $0x68] sm:$0xff]
    %v45 = vld [vmem:[#allocation2 + $0x70] sm:$0xff]
    %v46 = vld [vmem:[#allocation2 + $0x78] sm:$0xff]
    %v47 = vld [vmem:[#allocation2 + $0x80] sm:$0xff]
    %v48 = vld [vmem:[#allocation2 + $0x88] sm:$0xff]
    %v49 = vld [vmem:[#allocation2 + $0x90] sm:$0x1]
    %v50 = vld [vmem:[#allocation2 + $0x91] sm:$0x1]
    %v51 = vld [vmem:[#allocation2 + $0x92] sm:$0x1]
    %v52 = vld [vmem:[#allocation2 + $0x93] sm:$0x1]
    %v53 = vld [vmem:[#allocation2 + $0x94] sm:$0x1]
    %v54 = vld [vmem:[#allocation2 + $0x95] sm:$0x1]
    %v55 = vperm.slane %v49, 0
    %vm56 = vcmask 130048
    %v58 = vsel %vm56, %v27, 0
    %v61 = vsel %vm56, %v28, 0
    %v64 = vsel %vm56, %v29, 0
    %v67 = vsel %vm56, %v30, 0
    %69 = vmatpush.msra.mxu0 0.0
    %70 = vmatpush.msra.mxu0 0.0
    %71 = vmatpush.msra.mxu0 0.0
    %72 = vmatpush.msra.mxu0 0.0
    %73 = vmatpush.msra.mxu0 0.0
    %74 = vmatpush.msra.mxu0 0.0
    %75 = vmatpush.msra.mxu0 0.0
    %76 = vmatpush.msra.mxu0 0.0
    %77 = vmatpush.msra.mxu0 0.0
    %78 = vmatpush.msra.mxu0 0.0
    %79 = vmatpush.msra.mxu0 0.0
    %80 = vmatpush.msra.mxu0 0.0
    %81 = vmatpush.msra.mxu0 0.0
    %82 = vmatpush.msra.mxu0 0.0
    %83 = vmatpush.msra.mxu0 %v32
    %84 = vmatpush.msra.mxu0 %v31
    %85 = vmatmul.f32.gmra.mxu0 %v58
    %v86 = vpop.f32.mrf.mxu0
    %v87 = vadd.f32 %v55, %v86
    %88 = vmatmul.f32.gmra.mxu0 %v61
    %v89 = vpop.f32.mrf.mxu0
    %v90 = vadd.f32 %v55, %v89
    %91 = vmatmul.f32.gmra.mxu0 %v64
    %v92 = vpop.f32.mrf.mxu0
    %v93 = vadd.f32 %v55, %v92
    %94 = vmatmul.f32.gmra.mxu0 %v67
    %v95 = vpop.f32.mrf.mxu0
    %v96 = vadd.f32 %v55, %v95
    %97 = vdwg.mxu0
    %v98 = vmax.f32 %v87, 0.0
    %v99 = vmax.f32 %v90, 0.0
    %v100 = vmax.f32 %v93, 0.0
    %v101 = vmax.f32 %v96, 0.0
    %v102 = vperm.slane %v50, 0
    %vm103 = vcmask 261120
    %v105 = vsel %vm103, %v98, 0
    %v108 = vsel %vm103, %v99, 0
    %v111 = vsel %vm103, %v100, 0
    %v114 = vsel %vm103, %v101, 0
    %116 = vmatpush.msra.mxu0 0.0
    %117 = vmatpush.msra.mxu0 0.0
    %118 = vmatpush.msra.mxu0 0.0
    %119 = vmatpush.msra.mxu0 0.0
    %120 = vmatpush.msra.mxu0 0.0
    %121 = vmatpush.msra.mxu0 0.0
    %122 = vmatpush.msra.mxu0 0.0
    %123 = vmatpush.msra.mxu0 0.0
    %124 = vmatpush.msra.mxu0 0.0
    %125 = vmatpush.msra.mxu0 0.0
    %126 = vmatpush.msra.mxu0 0.0
    %127 = vmatpush.msra.mxu0 0.0
    %128 = vmatpush.msra.mxu0 %v36
    %129 = vmatpush.msra.mxu0 %v35
    %130 = vmatpush.msra.mxu0 %v34
    %131 = vmatpush.msra.mxu0 %v33
    %132 = vmatmul.f32.gmra.mxu0 %v105
    %v133 = vpop.f32.mrf.mxu0
    %v134 = vadd.f32 %v102, %v133
    %135 = vmatmul.f32.gmra.mxu0 %v108
    %v136 = vpop.f32.mrf.mxu0
    %v137 = vadd.f32 %v102, %v136
    %138 = vmatmul.f32.gmra.mxu0 %v111
    %v139 = vpop.f32.mrf.mxu0
    %v140 = vadd.f32 %v102, %v139
    %141 = vmatmul.f32.gmra.mxu0 %v114
    %v142 = vpop.f32.mrf.mxu0
    %v143 = vadd.f32 %v102, %v142
    %144 = vdwg.mxu0
    %v145 = vmax.f32 %v134, 0.0
    %v146 = vmax.f32 %v137, 0.0
    %v147 = vmax.f32 %v140, 0.0
    %v148 = vmax.f32 %v143, 0.0
    %v149 = vperm.slane %v51, 0
    %v151 = vsel %vm103, %v145, 0
    %v154 = vsel %vm103, %v146, 0
    %v157 = vsel %vm103, %v147, 0
    %v160 = vsel %vm103, %v148, 0
    %162 = vmatpush.msra.mxu0 0.0
    %163 = vmatpush.msra.mxu0 0.0
    %164 = vmatpush.msra.mxu0 0.0
    %165 = vmatpush.msra.mxu0 0.0
    %166 = vmatpush.msra.mxu0 0.0
    %167 = vmatpush.msra.mxu0 0.0
    %168 = vmatpush.msra.mxu0 0.0
    %169 = vmatpush.msra.mxu0 0.0
    %170 = vmatpush.msra.mxu0 0.0
    %171 = vmatpush.msra.mxu0 0.0
    %172 = vmatpush.msra.mxu0 0.0
    %173 = vmatpush.msra.mxu0 0.0
    %174 = vmatpush.msra.mxu0 %v40
    %175 = vmatpush.msra.mxu0 %v39
    %176 = vmatpush.msra.mxu0 %v38
    %177 = vmatpush.msra.mxu0 %v37
    %178 = vmatmul.f32.gmra.mxu0 %v151
    %v179 = vpop.f32.mrf.mxu0
    %v180 = vadd.f32 %v149, %v179
    %181 = vmatmul.f32.gmra.mxu0 %v154
    %v182 = vpop.f32.mrf.mxu0
    %v183 = vadd.f32 %v149, %v182
    %184 = vmatmul.f32.gmra.mxu0 %v157
    %v185 = vpop.f32.mrf.mxu0
    %v186 = vadd.f32 %v149, %v185
    %187 = vmatmul.f32.gmra.mxu0 %v160
    %v188 = vpop.f32.mrf.mxu0
    %v189 = vadd.f32 %v149, %v188
    %190 = vdwg.mxu0
    %v191 = vmax.f32 %v180, 0.0
    %v192 = vmax.f32 %v183, 0.0
    %v193 = vmax.f32 %v186, 0.0
    %v194 = vmax.f32 %v189, 0.0
    %v195 = vperm.slane %v52, 0
    %v197 = vsel %vm103, %v191, 0
    %v200 = vsel %vm103, %v192, 0
    %v203 = vsel %vm103, %v193, 0
    %v206 = vsel %vm103, %v194, 0
    %208 = vmatpush.msra.mxu0 0.0
    %209 = vmatpush.msra.mxu0 0.0
    %210 = vmatpush.msra.mxu0 0.0
    %211 = vmatpush.msra.mxu0 0.0
    %212 = vmatpush.msra.mxu0 0.0
    %213 = vmatpush.msra.mxu0 0.0
    %214 = vmatpush.msra.mxu0 0.0
    %215 = vmatpush.msra.mxu0 0.0
    %216 = vmatpush.msra.mxu0 0.0
    %217 = vmatpush.msra.mxu0 0.0
    %218 = vmatpush.msra.mxu0 0.0
    %219 = vmatpush.msra.mxu0 0.0
    %220 = vmatpush.msra.mxu0 %v44
    %221 = vmatpush.msra.mxu0 %v43
    %222 = vmatpush.msra.mxu0 %v42
    %223 = vmatpush.msra.mxu0 %v41
    %224 = vmatmul.f32.gmra.mxu0 %v197
    %v225 = vpop.f32.mrf.mxu0
    %v226 = vadd.f32 %v195, %v225
    %227 = vmatmul.f32.gmra.mxu0 %v200
    %v228 = vpop.f32.mrf.mxu0
    %v229 = vadd.f32 %v195, %v228
    %230 = vmatmul.f32.gmra.mxu0 %v203
    %v231 = vpop.f32.mrf.mxu0
    %v232 = vadd.f32 %v195, %v231
    %233 = vmatmul.f32.gmra.mxu0 %v206
    %v234 = vpop.f32.mrf.mxu0
    %v235 = vadd.f32 %v195, %v234
    %236 = vdwg.mxu0
    %v237 = vxor.u32 %v226, 2147483648
    %v238 = vxor.u32 %v229, 2147483648
    %v239 = vxor.u32 %v232, 2147483648
    %v240 = vxor.u32 %v235, 2147483648
    %v241 = vmul.f32 %v237, 1.442695
    %v242 = vpow.pop %v241
    %v243 = vmul.f32 %v238, 1.442695
    %v244 = vpow.pop %v243
    %v245 = vmul.f32 %v239, 1.442695
    %v246 = vpow.pop %v245
    %v247 = vmul.f32 %v240, 1.442695
    %v248 = vpow.pop %v247
    %v249 = vadd.f32 %v242, 1.0
    %v250 = vadd.f32 %v244, 1.0
    %v251 = vadd.f32 %v246, 1.0
    %v252 = vadd.f32 %v248, 1.0
    %v253 = vrcp.pop %v249
    %v254 = vmul.f32 %v249, %v253
    %v255 = vsub.f32 1.0, %v254
    %v256 = vmul.f32 %v253, %v255
    %v257 = vadd.f32 %v253, %v256
    %vm258 = vweird.f32 %v249
    %vm259 = vweird.f32 %v253
    %vm260 = vmor %vm258, %vm259
    %v261 = vsel %vm260, %v253, %v257
    %v262 = vand.u32 2147483647, %v249
    %vm263 = vcmp.eq.f32.partialorder %v262, 8.507059e+37
    %v264 = vand.u32 %v249, 2147483648
    %v265 = vor.u32 1.1754944e-38, %v264
    %v266 = vsel %vm263, %v265, %v261
    %v267 = vmul.f32 1.0, %v266
    %v268 = vrcp.pop %v250
    %v269 = vmul.f32 %v250, %v268
    %v270 = vsub.f32 1.0, %v269
    %v271 = vmul.f32 %v268, %v270
    %v272 = vadd.f32 %v268, %v271
    %vm273 = vweird.f32 %v250
    %vm274 = vweird.f32 %v268
    %vm275 = vmor %vm273, %vm274
    %v276 = vsel %vm275, %v268, %v272
    %v277 = vand.u32 2147483647, %v250
    %vm278 = vcmp.eq.f32.partialorder %v277, 8.507059e+37
    %v279 = vand.u32 %v250, 2147483648
    %v280 = vor.u32 1.1754944e-38, %v279
    %v281 = vsel %vm278, %v280, %v276
    %v282 = vmul.f32 1.0, %v281
    %v283 = vrcp.pop %v251
    %v284 = vmul.f32 %v251, %v283
    %v285 = vsub.f32 1.0, %v284
    %v286 = vmul.f32 %v283, %v285
    %v287 = vadd.f32 %v283, %v286
    %vm288 = vweird.f32 %v251
    %vm289 = vweird.f32 %v283
    %vm290 = vmor %vm288, %vm289
    %v291 = vsel %vm290, %v283, %v287
    %v292 = vand.u32 2147483647, %v251
    %vm293 = vcmp.eq.f32.partialorder %v292, 8.507059e+37
    %v294 = vand.u32 %v251, 2147483648
    %v295 = vor.u32 1.1754944e-38, %v294
    %v296 = vsel %vm293, %v295, %v291
    %v297 = vmul.f32 1.0, %v296
    %v298 = vrcp.pop %v252
    %v299 = vmul.f32 %v252, %v298
    %v300 = vsub.f32 1.0, %v299
    %v301 = vmul.f32 %v298, %v300
    %v302 = vadd.f32 %v298, %v301
    %vm303 = vweird.f32 %v252
    %vm304 = vweird.f32 %v298
    %vm305 = vmor %vm303, %vm304
    %v306 = vsel %vm305, %v298, %v302
    %v307 = vand.u32 2147483647, %v252
    %vm308 = vcmp.eq.f32.partialorder %v307, 8.507059e+37
    %v309 = vand.u32 %v252, 2147483648
    %v310 = vor.u32 1.1754944e-38, %v309
    %v311 = vsel %vm308, %v310, %v306
    %v312 = vmul.f32 1.0, %v311
    %317 = vrot.lane.b32.xlu0 %v226, 64
    %v318 = vpop.permute.xlu0 %317
    %319 = vrot.lane.b32.xlu0 %v229, 64
    %v320 = vpop.permute.xlu0 %319
    %321 = vrot.lane.b32.xlu0 %v232, 64
    %v322 = vpop.permute.xlu0 %321
    %323 = vrot.lane.b32.xlu0 %v235, 64
    %v324 = vpop.permute.xlu0 %323
    %v329 = vmul.f32 %v267, %v318
    %v330 = vmul.f32 %v282, %v320
    %v331 = vmul.f32 %v297, %v322
    %v332 = vmul.f32 %v312, %v324
    %v333 = vperm.slane %v53, 0
    %v334 = vadd.f32 %v333, %v329
    %v335 = vadd.f32 %v333, %v330
    %v336 = vadd.f32 %v333, %v331
    %v337 = vadd.f32 %v333, %v332
    %v338 = vtanh.pop %v334
    %v339 = vtanh.pop %v335
    %v340 = vtanh.pop %v336
    %v341 = vtanh.pop %v337
    %v342 = vsub.f32 1.0, %v267
    %v343 = vsub.f32 1.0, %v282
    %v344 = vsub.f32 1.0, %v297
    %v345 = vsub.f32 1.0, %v312
    %350 = vrot.lane.b32.xlu0 %v338, 32
    %v351 = vpop.permute.xlu0 %350
    %352 = vrot.lane.b32.xlu0 %v339, 32
    %v353 = vpop.permute.xlu0 %352
    %354 = vrot.lane.b32.xlu0 %v340, 32
    %v355 = vpop.permute.xlu0 %354
    %356 = vrot.lane.b32.xlu0 %v341, 32
    %v357 = vpop.permute.xlu0 %356
    %v362 = vmul.f32 %v342, %v351
    %v363 = vmul.f32 %v343, %v353
    %v364 = vmul.f32 %v344, %v355
    %v365 = vmul.f32 %v345, %v357
    %366 = vrot.lane.b32.xlu0 %v191, 32
    %v367 = vpop.permute.xlu0 %366
    %368 = vrot.lane.b32.xlu0 %v192, 32
    %v369 = vpop.permute.xlu0 %368
    %370 = vrot.lane.b32.xlu0 %v193, 32
    %v371 = vpop.permute.xlu0 %370
    %372 = vrot.lane.b32.xlu0 %v194, 32
    %v373 = vpop.permute.xlu0 %372
    %v378 = vmul.f32 %v267, %v367
    %v379 = vmul.f32 %v282, %v369
    %v380 = vmul.f32 %v297, %v371
    %v381 = vmul.f32 %v312, %v373
    %v382 = vadd.f32 %v362, %v378
    %v383 = vadd.f32 %v363, %v379
    %v384 = vadd.f32 %v364, %v380
    %v385 = vadd.f32 %v365, %v381
    %v386 = vperm.slane %v54, 0
    %391 = vrot.lane.b32.xlu0 %v382, 96
    %v392 = vpop.permute.xlu0 %391
    %393 = vrot.lane.b32.xlu0 %v383, 96
    %v394 = vpop.permute.xlu0 %393
    %395 = vrot.lane.b32.xlu0 %v384, 96
    %v396 = vpop.permute.xlu0 %395
    %397 = vrot.lane.b32.xlu0 %v385, 96
    %v398 = vpop.permute.xlu0 %397
    %v399 = vsel %vm103, %v392, 0
    %v401 = vsel %vm103, %v394, 0
    %v403 = vsel %vm103, %v396, 0
    %v405 = vsel %vm103, %v398, 0
    %407 = vmatpush.msra.mxu0 0.0
    %408 = vmatpush.msra.mxu0 0.0
    %409 = vmatpush.msra.mxu0 0.0
    %410 = vmatpush.msra.mxu0 0.0
    %411 = vmatpush.msra.mxu0 0.0
    %412 = vmatpush.msra.mxu0 0.0
    %413 = vmatpush.msra.mxu0 0.0
    %414 = vmatpush.msra.mxu0 0.0
    %415 = vmatpush.msra.mxu0 0.0
    %416 = vmatpush.msra.mxu0 0.0
    %417 = vmatpush.msra.mxu0 0.0
    %418 = vmatpush.msra.mxu0 0.0
    %419 = vmatpush.msra.mxu0 %v48
    %420 = vmatpush.msra.mxu0 %v47
    %421 = vmatpush.msra.mxu0 %v46
    %422 = vmatpush.msra.mxu0 %v45
    %423 = vmatmul.f32.gmra.mxu0 %v399
    %v424 = vpop.f32.mrf.mxu0
    %v425 = vadd.f32 %v386, %v424
    %426 = vmatmul.f32.gmra.mxu0 %v401
    %v427 = vpop.f32.mrf.mxu0
    %v428 = vadd.f32 %v386, %v427
    %429 = vmatmul.f32.gmra.mxu0 %v403
    %v430 = vpop.f32.mrf.mxu0
    %v431 = vadd.f32 %v386, %v430
    %432 = vmatmul.f32.gmra.mxu0 %v405
    %v433 = vpop.f32.mrf.mxu0
    %v434 = vadd.f32 %v386, %v433
    %435 = vdwg.mxu0
    %vm436 = vcmask 15360
    %v437 = vsel %vm436, %v425, -inf
    %438 = vmax.xlane.f32.xlu0 %v437
    %v439 = vpop.xlane.xlu0 %438
    %v440 = vsel %vm436, %v428, -inf
    %441 = vmax.xlane.f32.xlu0 %v440
    %v442 = vpop.xlane.xlu0 %441
    %v443 = vsel %vm436, %v431, -inf
    %444 = vmax.xlane.f32.xlu0 %v443
    %v445 = vpop.xlane.xlu0 %444
    %v446 = vsel %vm436, %v434, -inf
    %447 = vmax.xlane.f32.xlu0 %v446
    %v448 = vpop.xlane.xlu0 %447
    %v449 = vsub.f32 %v425, %v439
    %v450 = vsub.f32 %v428, %v442
    %v451 = vsub.f32 %v431, %v445
    %v452 = vsub.f32 %v434, %v448
    %v453 = vmul.f32 %v449, 1.442695
    %v454 = vpow.pop %v453
    %v455 = vmul.f32 %v450, 1.442695
    %v456 = vpow.pop %v455
    %v457 = vmul.f32 %v451, 1.442695
    %v458 = vpow.pop %v457
    %v459 = vmul.f32 %v452, 1.442695
    %v460 = vpow.pop %v459
    %v461 = vsel %vm436, %v454, 0.0
    %462 = vadd.xlane.f32.xlu0 %v461
    %v463 = vpop.xlane.xlu0 %462
    %v464 = vsel %vm436, %v456, 0.0
    %465 = vadd.xlane.f32.xlu0 %v464
    %v466 = vpop.xlane.xlu0 %465
    %v467 = vsel %vm436, %v458, 0.0
    %468 = vadd.xlane.f32.xlu0 %v467
    %v469 = vpop.xlane.xlu0 %468
    %v470 = vsel %vm436, %v460, 0.0
    %471 = vadd.xlane.f32.xlu0 %v470
    %v472 = vpop.xlane.xlu0 %471
    %v473 = vlog2.pop %v463
    %v474 = vmul.f32 %v473, 0.6931472
    %v475 = vlog2.pop %v466
    %v476 = vmul.f32 %v475, 0.6931472
    %v477 = vlog2.pop %v469
    %v478 = vmul.f32 %v477, 0.6931472
    %v479 = vlog2.pop %v472
    %v480 = vmul.f32 %v479, 0.6931472
    %v481 = vadd.f32 %v439, %v474
    %v482 = vadd.f32 %v442, %v476
    %v483 = vadd.f32 %v445, %v478
    %v484 = vadd.f32 %v448, %v480
    %v485 = vsub.f32 %v425, %v481
    %v486 = vsub.f32 %v428, %v482
    %v487 = vsub.f32 %v431, %v483
    %v488 = vsub.f32 %v434, %v484
    %489 = vst.msk [vmem:[%s2] sm:$0xff] %vm436, %v485
    %490 = vst.msk [vmem:[%s2 + $0x8] sm:$0xff] %vm436, %v486
    %491 = vst.msk [vmem:[%s2 + $0x10] sm:$0xff] %vm436, %v487
    %492 = vst.msk [vmem:[%s2 + $0x18] sm:$0xff] %vm436, %v488
    // Predicated region
    $region14: #{tpu_custom_call.1} parent=1 // pred_check
      _
    $region15: #{tpu_custom_call.1} parent=1 // pred_check_branch
      %494 = sbr.rel (0) target = $region17
    $region16: #{tpu_custom_call.1} parent=1 // pred_region
      _
    $region17: #{tpu_custom_call.1} parent=1 // pred_fallthru
      _
    // Predicated region
    $region18: #{tpu_custom_call.1} parent=1 // pred_check
      _
    $region19: #{tpu_custom_call.1} parent=1 // pred_check_branch
      %496 = sbr.rel (0) target = $region21
    $region20: #{tpu_custom_call.1} parent=1 // pred_region
      _
    $region21: #{tpu_custom_call.1} parent=1 // pred_fallthru
      _
    %497 = vsyncpa [#allocation3], 1

</llo_original>
